<compile_context>
chip_gen: v6e
topology: v6e:2x2x1
jax: 0.10.0
libtpu: 0.0.40
codegen_flags: <defaults>
</compile_context>

<pallas_src>
import math

import jax
import jax.numpy as jnp
import numpy as np
from jax.experimental import pallas as pl
from jax.experimental.pallas import tpu as pltpu

_LANE = 128
_MIB = 1024 * 1024


def _layer_scale_kernel(x_ref, g_ref, o_ref):
    # Per vreg: 1 vld + 1 vmul + 1 vst.  gamma block is (1, C) and broadcasts
    # over the rows of the (tile_rows, C) x block on the VPU.
    o_ref[...] = x_ref[...] * g_ref[...]


def _sublane_multiple(dtype) -> int:
    # Packed-sublane row multiple per dtype width: f32 -> 8, bf16 -> 16, int8/fp8 -> 32.
    return {4: 8, 2: 16, 1: 32}.get(jnp.dtype(dtype).itemsize, 8)


def _pick_tile_rows(n_rows, row_bytes, sublane, block_bytes):
    """Largest sublane-multiple row tile within the per-block byte budget that
    still leaves >= 2 grid steps when there are enough rows (v7x megacore)."""
    if n_rows <= sublane:
        return n_rows  # full-extent block: always a legal block shape
    budget_rows = max(block_bytes // row_bytes, 1)
    tile = max((budget_rows // sublane) * sublane, sublane)
    if n_rows >= 2 * sublane:
        # Cap at ~half the rows so the grid has at least 2 steps.
        half = max((((n_rows + 1) // 2) // sublane) * sublane, sublane)
        tile = min(tile, half)
    return min(tile, n_rows)


def layer_scale(x, gamma, *, block_bytes=4 * _MIB, interpret=False):
    """Pallas TPU implementation of LayerScale.forward: x * gamma.

    x: (..., C), gamma: (C,).  The multiply runs in
    jnp.promote_types(x.dtype, gamma.dtype) — same result dtype PyTorch
    produces for `x * self.gamma` with an f32 Parameter.
    """
    orig_shape = x.shape
    C = int(orig_shape[-1])
    assert gamma.shape == (C,), f"gamma must be ({C},), got {gamma.shape}"

    out_dtype = jnp.promote_types(x.dtype, gamma.dtype)

    # Empty input: nothing to launch.
    if x.size == 0:
        return (x.astype(out_dtype) * gamma.astype(out_dtype)).reshape(orig_shape)

    # Flatten leading dims -> rows; keep C as the lane-minor dim.
    R = 1
    for d in orig_shape[:-1]:
        R *= int(d)
    x2 = x.reshape(R, C).astype(out_dtype)
    g = gamma.astype(out_dtype)

    # Lane-dense repacking for C not a multiple of 128 (e.g. mapet's C=32):
    # fold k rows into one packed row of width k*C = lcm(C, 128) and tile
    # gamma k times.  Pure reshape of contiguous memory, so unpacking at the
    # end is also a reshape.  Fall back to the plain layout when R % k != 0.
    k = 1
    if C % _LANE != 0:
        k_cand = _LANE // math.gcd(C, _LANE)
        if k_cand > 1 and R % k_cand == 0:
            k = k_cand
    Rp, Cp = R // k, C * k
    x2 = x2.reshape(Rp, Cp)
    g2 = (jnp.tile(g, k) if k > 1 else g).reshape(1, Cp)

    dsize = jnp.dtype(out_dtype).itemsize
    sublane = _sublane_multiple(out_dtype)
    tile_rows = _pick_tile_rows(Rp, Cp * dsize, sublane, block_bytes)
    grid = (pl.cdiv(Rp, tile_rows),)

    # VMEM accounting: 2x double-buffered x-in + 2x out blocks + (<=2) gamma
    # blocks, plus headroom for compiler-internal scratch.  Explicit limit so
    # the default scoped-VMEM cap never rejects the tiling.
    block_x_bytes = tile_rows * Cp * dsize
    vmem_needed = 4 * block_x_bytes + 2 * Cp * dsize
    vmem_limit = int(min(max(vmem_needed * 3 // 2 + 2 * _MIB, 8 * _MIB), 48 * _MIB))

    def run(gamma_pipeline_mode):
        gamma_kwargs = {}
        if gamma_pipeline_mode is not None:
            gamma_kwargs["pipeline_mode"] = gamma_pipeline_mode
        return pl.pallas_call(
            _layer_scale_kernel,
            grid=grid,
            in_specs=[
                # x tile: lane-dense minor dim, budgeted row tile.
                pl.BlockSpec((tile_rows, Cp), lambda i: (i, 0)),
                # gamma: constant block index across the grid -> stays resident.
                pl.BlockSpec((1, Cp), lambda i: (0, 0), **gamma_kwargs),
            ],
            out_specs=pl.BlockSpec((tile_rows, Cp), lambda i: (i, 0)),
            out_shape=jax.ShapeDtypeStruct((Rp, Cp), out_dtype),
            compiler_params=pltpu.CompilerParams(
                dimension_semantics=("parallel",),
                vmem_limit_bytes=vmem_limit,
            ),
            interpret=interpret,
        )(x2, g2)

    if hasattr(pl, "Buffered"):
        try:
            # gamma's block index never changes: a single buffer is enough.
            out2 = run(pl.Buffered(1))
        except Exception:
            # pipeline_mode not supported on this jax version -> default buffering.
            out2 = run(None)
    else:
        out2 = run(None)

    return out2.reshape(orig_shape)


if __name__ == "__main__":
    key = jax.random.PRNGKey(0)
    k1, k2, k3, k4, k5 = jax.random.split(key, 5)
    init_values = 1e-5

    # Case 1: token shape as used by mapet blocks, (B, N, C) with C=32.
    B, N, C = 2, 8, 32
    x = jax.random.normal(k1, (B, N, C), jnp.float32)
    gamma = (init_values * jnp.ones((C,), jnp.float32)
             + 0.1 * jax.random.normal(k2, (C,), jnp.float32))
    out = layer_scale(x, gamma)
    jax.block_until_ready(out)
    np.testing.assert_allclose(
        np.asarray(out), np.asarray(x) * np.asarray(gamma), rtol=1e-6, atol=1e-6)

    # Case 2: repacked lanes (C=32 -> Cp=128) + multi-step grid with a partial
    # last row block (Rp=10, tile_rows=8).
    x2 = jax.random.normal(k3, (5, 8, C), jnp.float32)
    out2 = layer_scale(x2, gamma, block_bytes=8 * 128 * 4)
    jax.block_until_ready(out2)
    np.testing.assert_allclose(
        np.asarray(out2), np.asarray(x2) * np.asarray(gamma), rtol=1e-6, atol=1e-6)

    # Case 3: C already a multiple of 128, uneven row count, default tiling
    # (exercises the ">= 2 grid steps" split and masked partial last block).
    C3 = 128
    x3 = jax.random.normal(k4, (2, 50, C3), jnp.float32)
    g3 = (init_values * jnp.ones((C3,), jnp.float32)
          + 0.1 * jax.random.normal(k5, (C3,), jnp.float32))
    out3 = layer_scale(x3, g3)
    jax.block_until_ready(out3)
    np.testing.assert_allclose(
        np.asarray(out3), np.asarray(x3) * np.asarray(g3), rtol=1e-6, atol=1e-6)

    # Case 4: bf16 activations + bf16 gamma (exercises 16-row sublane rounding).
    x4 = jax.random.normal(k1, (4, 64, C3), jnp.float32).astype(jnp.bfloat16)
    g4 = g3.astype(jnp.bfloat16)
    out4 = layer_scale(x4, g4)
    jax.block_until_ready(out4)
    ref4 = np.asarray(x4).astype(np.float32) * np.asarray(g4).astype(np.float32)
    np.testing.assert_allclose(
        np.asarray(out4).astype(np.float32), ref4, rtol=2e-2, atol=2e-2)

    print("KERNEL_OK")
</pallas_src>

<mosaic_0001>
module attributes {stable_mosaic.version = 11 : i64} {
  func.func @_layer_scale_kernel(%arg0: i32, %arg1: memref<4x128xf32, #tpu.memory_space<vmem>>, %arg2: memref<1x128xf32, #tpu.memory_space<vmem>>, %arg3: memref<4x128xf32, #tpu.memory_space<vmem>>) attributes {dimension_semantics = [#tpu.dimension_semantics<parallel>], iteration_bounds = array<i64: 1>, scalar_prefetch = 0 : i64, scratch_operands = 0 : i64, tpu.core_type = #tpu.core_type<tc>, window_params = [{transform_indices = @transform_0, window_bounds = array<i64: 4, 128>}, {pipeline_mode = #tpu.pipeline_mode<synchronous>, transform_indices = @transform_1, window_bounds = array<i64: 1, 128>}, {transform_indices = @transform_2, window_bounds = array<i64: 4, 128>}]} {
    %c0 = arith.constant 0 : index
    %c0_0 = arith.constant 0 : index
    %0 = vector.load %arg1[%c0, %c0_0] : memref<4x128xf32, #tpu.memory_space<vmem>>, vector<4x128xf32>
    %c0_1 = arith.constant 0 : index
    %c0_2 = arith.constant 0 : index
    %1 = vector.load %arg2[%c0_1, %c0_2] : memref<1x128xf32, #tpu.memory_space<vmem>>, vector<1x128xf32>
    %2 = vector.broadcast %1 : vector<1x128xf32> to vector<4x128xf32>
    %3 = arith.mulf %0, %2 : vector<4x128xf32>
    %c0_3 = arith.constant 0 : index
    %c0_4 = arith.constant 0 : index
    %4 = vector.load %arg3[%c0_3, %c0_4] : memref<4x128xf32, #tpu.memory_space<vmem>>, vector<4x128xf32>
    tpu.vector_store %arg3[%c0_3, %c0_4], %3 {strides = array<i32>} : memref<4x128xf32, #tpu.memory_space<vmem>>, vector<4x128xf32>,
    return
  }
  func.func @transform_0(%arg0: i32) -> (i32, i32) {
    %c0_i32 = arith.constant 0 : i32
    %c0_i32_0 = arith.constant 0 : i32
    return %arg0, %c0_i32 : i32, i32
  }
  func.func @transform_1(%arg0: i32) -> (i32, i32) {
    %c0_i32 = arith.constant 0 : i32
    %c0_i32_0 = arith.constant 0 : i32
    %c0_i32_1 = arith.constant 0 : i32
    return %c0_i32, %c0_i32_0 : i32, i32
  }
  func.func @transform_2(%arg0: i32) -> (i32, i32) {
    %c0_i32 = arith.constant 0 : i32
    %c0_i32_0 = arith.constant 0 : i32
    return %arg0, %c0_i32 : i32, i32
  }
}

module attributes {stable_mosaic.version = 11 : i64} {
  func.func @_layer_scale_kernel(%arg0: i32, %arg1: memref<4x128xf32, #tpu.memory_space<vmem>>, %arg2: memref<1x128xf32, #tpu.memory_space<vmem>>, %arg3: memref<4x128xf32, #tpu.memory_space<vmem>>) attributes {dimension_semantics = [#tpu.dimension_semantics<parallel>], iteration_bounds = array<i64: 1>, scalar_prefetch = 0 : i64, scratch_operands = 0 : i64, tpu.core_type = #tpu.core_type<tc>, window_params = [{transform_indices = @transform_0, window_bounds = array<i64: 4, 128>}, {pipeline_mode = #tpu.pipeline_mode<synchronous>, transform_indices = @transform_1, window_bounds = array<i64: 1, 128>}, {transform_indices = @transform_2, window_bounds = array<i64: 4, 128>}]} {
    %c0 = arith.constant 0 : index
    %c0_0 = arith.constant 0 : index
    %0 = vector.load %arg1[%c0, %c0_0] : memref<4x128xf32, #tpu.memory_space<vmem>>, vector<4x128xf32>
    %c0_1 = arith.constant 0 : index
    %c0_2 = arith.constant 0 : index
    %1 = vector.load %arg2[%c0_1, %c0_2] : memref<1x128xf32, #tpu.memory_space<vmem>>, vector<1x128xf32>
    %2 = vector.broadcast %1 : vector<1x128xf32> to vector<4x128xf32>
    %3 = arith.mulf %0, %2 : vector<4x128xf32>
    %c0_3 = arith.constant 0 : index
    %c0_4 = arith.constant 0 : index
    %4 = vector.load %arg3[%c0_3, %c0_4] : memref<4x128xf32, #tpu.memory_space<vmem>>, vector<4x128xf32>
    tpu.vector_store %arg3[%c0_3, %c0_4], %3 {strides = array<i32>} : memref<4x128xf32, #tpu.memory_space<vmem>>, vector<4x128xf32>,
    return
  }
  func.func @transform_0(%arg0: i32) -> (i32, i32) {
    %c0_i32 = arith.constant 0 : i32
    %c0_i32_0 = arith.constant 0 : i32
    return %arg0, %c0_i32 : i32, i32
  }
  func.func @transform_1(%arg0: i32) -> (i32, i32) {
    %c0_i32 = arith.constant 0 : i32
    %c0_i32_0 = arith.constant 0 : i32
    %c0_i32_1 = arith.constant 0 : i32
    return %c0_i32, %c0_i32_0 : i32, i32
  }
  func.func @transform_2(%arg0: i32) -> (i32, i32) {
    %c0_i32 = arith.constant 0 : i32
    %c0_i32_0 = arith.constant 0 : i32
    return %arg0, %c0_i32 : i32, i32
  }
}

</mosaic_0001>

<llo_original>
// kernel: tpu_custom_call.1
$region0: #{tpu_custom_call.1}
  #allocation0 [shape = 'u32[]', space=smem, size = 0x4, offset = 0x4, fixed_abs, tag = 'smem constant byte address 0x4 - core index']
  #allocation1 [shape = 'u32[144,128]{1,0:T(1,128)}', space=vmem, size = 0x12000, scoped, tag = 'internal scratch']
  %s0 = inlined_call_operand.hbm [shape: f32[4,128], index: 0, kind: input, shape index: {}]
  %s1 = inlined_call_operand.vmem [shape: f32[1,128], index: 1, kind: input, shape index: {}]
  %s2 = inlined_call_operand.hbm [shape: f32[4,128], index: 2, kind: output, shape index: {}]
  %s3 = sld [smem:[#allocation0]]
  $region22: #{tpu_custom_call.1} parent=0
    _
  %s5 = ssub.s32 1, %s3
  %s6 = scalar_select 0, %s5, %s3
  $region1: #{tpu_custom_call.1} parent=0
    #allocation2 [shape = 'u8[2048]{0}', space=vmem, size = 0x800, scoped, tag = 'input window, operand 0, single buffered']
    #allocation3 [shape = 's32[1]{0}', space=sflag, size = 0x4, scoped, tag = 'scoped memory for tpu_custom_call.1']
    #allocation4 [shape = 's32[1]{0}', space=sflag, size = 0x4, scoped, tag = 'scoped memory for tpu_custom_call.1']
    #allocation5 [shape = 'u8[2048]{0}', space=vmem, size = 0x800, scoped, tag = 'output window, operand 0, single buffered']
    %7 = vsyncpa [#allocation3], 0
    %8 = vsyncpa [#allocation4], 0
    // Predicated region
    $region2: #{tpu_custom_call.1} parent=1 // pred_check
      _
    $region3: #{tpu_custom_call.1} parent=1 // pred_check_branch
      %10 = sbr.rel (0) target = $region5
    $region4: #{tpu_custom_call.1} parent=1 // pred_region
      %s12 = ssub.s32 64, 64
      %13 = vsyncadd [#allocation3], %s12
      %s15 = sshll.u32 [#allocation2], 4
      %s16 = int_to_ptr.vmem [resolvable:$true] %s15
      %18 = dma.hbm_to_vmem [thread:$0]  %s0, 64, %s16, [#allocation3]
    $region5: #{tpu_custom_call.1} parent=1 // pred_fallthru
      _
    // Predicated region
    $region6: #{tpu_custom_call.1} parent=1 // pred_check
      _
    $region7: #{tpu_custom_call.1} parent=1 // pred_check_branch
      %20 = sbr.rel (0) target = $region9
    $region8: #{tpu_custom_call.1} parent=1 // pred_region
      _
    $region9: #{tpu_custom_call.1} parent=1 // pred_fallthru
      _
    // Predicated region
    $region10: #{tpu_custom_call.1} parent=1 // pred_check
      _
    $region11: #{tpu_custom_call.1} parent=1 // pred_check_branch
      %22 = sbr.rel (0) target = $region13
    $region12: #{tpu_custom_call.1} parent=1 // pred_region
      %23 = dma.done [#allocation3], 64
    $region13: #{tpu_custom_call.1} parent=1 // pred_fallthru
      _
    %v24 = vld [vmem:[#allocation2] sm:$0xf]
    %v25 = vld [vmem:[%s1] sm:$0x1]
    %v27 = vlaneseq
    %v28 = vshrl.u32 %v27, 7
    %v29 = vsub.s32 0, %v28
    %v30 = vrot.slane %v25, %v29
    %v32 = vmul.f32 %v24, %v30
    %33 = vst [vmem:[#allocation5] sm:$0xf] %v32
    // Predicated region
    $region14: #{tpu_custom_call.1} parent=1 // pred_check
      _
    $region15: #{tpu_custom_call.1} parent=1 // pred_check_branch
      %35 = sbr.rel (0) target = $region17
    $region16: #{tpu_custom_call.1} parent=1 // pred_region
      %s37 = ssub.s32 64, 64
      %38 = vsyncadd [#allocation4], %s37
      %s40 = sshll.u32 [#allocation5], 4
      %s41 = int_to_ptr.vmem [resolvable:$true] %s40
      %43 = dma.vmem_to_hbm [thread:$0]  %s41, 64, %s2, [#allocation4]
    $region17: #{tpu_custom_call.1} parent=1 // pred_fallthru
      _
    // Predicated region
    $region18: #{tpu_custom_call.1} parent=1 // pred_check
      _
    $region19: #{tpu_custom_call.1} parent=1 // pred_check_branch
      %45 = sbr.rel (0) target = $region21
    $region20: #{tpu_custom_call.1} parent=1 // pred_region
      %46 = dma.done [#allocation4], 64
    $region21: #{tpu_custom_call.1} parent=1 // pred_fallthru
      _
    %47 = vsyncpa [#allocation3], 1
    %48 = vsyncpa [#allocation4], 1

// kernel: tpu_custom_call.1
$region0: #{tpu_custom_call.1}
  #allocation0 [shape = 'u32[]', space=smem, size = 0x4, offset = 0x4, fixed_abs, tag = 'smem constant byte address 0x4 - core index']
  #allocation1 [shape = 'u32[144,128]{1,0:T(1,128)}', space=vmem, size = 0x12000, scoped, tag = 'internal scratch']
  %s0 = inlined_call_operand.hbm [shape: f32[4,128], index: 0, kind: input, shape index: {}]
  %s1 = inlined_call_operand.vmem [shape: f32[1,128], index: 1, kind: input, shape index: {}]
  %s2 = inlined_call_operand.hbm [shape: f32[4,128], index: 2, kind: output, shape index: {}]
  %s3 = sld [smem:[#allocation0]]
  $region22: #{tpu_custom_call.1} parent=0
    _
  %s5 = ssub.s32 1, %s3
  %s6 = scalar_select 0, %s5, %s3
  $region1: #{tpu_custom_call.1} parent=0
    #allocation2 [shape = 'u8[2048]{0}', space=vmem, size = 0x800, scoped, tag = 'input window, operand 0, single buffered']
    #allocation3 [shape = 's32[1]{0}', space=sflag, size = 0x4, scoped, tag = 'scoped memory for tpu_custom_call.1']
    #allocation4 [shape = 's32[1]{0}', space=sflag, size = 0x4, scoped, tag = 'scoped memory for tpu_custom_call.1']
    #allocation5 [shape = 'u8[2048]{0}', space=vmem, size = 0x800, scoped, tag = 'output window, operand 0, single buffered']
    %7 = vsyncpa [#allocation3], 0
    %8 = vsyncpa [#allocation4], 0
    // Predicated region
    $region2: #{tpu_custom_call.1} parent=1 // pred_check
      _
    $region3: #{tpu_custom_call.1} parent=1 // pred_check_branch
      %10 = sbr.rel (0) target = $region5
    $region4: #{tpu_custom_call.1} parent=1 // pred_region
      %s12 = ssub.s32 64, 64
      %13 = vsyncadd [#allocation3], %s12
      %s15 = sshll.u32 [#allocation2], 4
      %s16 = int_to_ptr.vmem [resolvable:$true] %s15
      %18 = dma.hbm_to_vmem [thread:$0]  %s0, 64, %s16, [#allocation3]
    $region5: #{tpu_custom_call.1} parent=1 // pred_fallthru
      _
    // Predicated region
    $region6: #{tpu_custom_call.1} parent=1 // pred_check
      _
    $region7: #{tpu_custom_call.1} parent=1 // pred_check_branch
      %20 = sbr.rel (0) target = $region9
    $region8: #{tpu_custom_call.1} parent=1 // pred_region
      _
    $region9: #{tpu_custom_call.1} parent=1 // pred_fallthru
      _
    // Predicated region
    $region10: #{tpu_custom_call.1} parent=1 // pred_check
      _
    $region11: #{tpu_custom_call.1} parent=1 // pred_check_branch
      %22 = sbr.rel (0) target = $region13
    $region12: #{tpu_custom_call.1} parent=1 // pred_region
      %23 = dma.done [#allocation3], 64
    $region13: #{tpu_custom_call.1} parent=1 // pred_fallthru
      _
    %v24 = vld [vmem:[#allocation2] sm:$0xf]
    %v25 = vld [vmem:[%s1] sm:$0x1]
    %v27 = vlaneseq
    %v28 = vshrl.u32 %v27, 7
    %v29 = vsub.s32 0, %v28
    %v30 = vrot.slane %v25, %v29
    %v32 = vmul.f32 %v24, %v30
    %33 = vst [vmem:[#allocation5] sm:$0xf] %v32
    // Predicated region
    $region14: #{tpu_custom_call.1} parent=1 // pred_check
      _
    $region15: #{tpu_custom_call.1} parent=1 // pred_check_branch
      %35 = sbr.rel (0) target = $region17
    $region16: #{tpu_custom_call.1} parent=1 // pred_region
      %s37 = ssub.s32 64, 64
      %38 = vsyncadd [#allocation4], %s37
      %s40 = sshll.u32 [#allocation5], 4
      %s41 = int_to_ptr.vmem [resolvable:$true] %s40
      %43 = dma.vmem_to_hbm [thread:$0]  %s41, 64, %s2, [#allocation4]
    $region17: #{tpu_custom_call.1} parent=1 // pred_fallthru
      _
    // Predicated region
    $region18: #{tpu_custom_call.1} parent=1 // pred_check
      _
    $region19: #{tpu_custom_call.1} parent=1 // pred_check_branch
      %45 = sbr.rel (0) target = $region21
    $region20: #{tpu_custom_call.1} parent=1 // pred_region
      %46 = dma.done [#allocation4], 64
    $region21: #{tpu_custom_call.1} parent=1 // pred_fallthru
      _
    %47 = vsyncpa [#allocation3], 1
    %48 = vsyncpa [#allocation4], 1

</llo_original>
